<compile_context>
chip_gen: v6e
topology: v6e:2x2x1
jax: 0.10.0
libtpu: 0.0.40
codegen_flags: <defaults>
</compile_context>

<pallas_src>
import functools

import jax
import jax.numpy as jnp
from jax.experimental import pallas as pl
from jax.experimental.pallas import tpu as pltpu


def _round_up(x: int, m: int) -> int:
    return ((x + m - 1) // m) * m


def pod_deeponet_tile_kernel(xfa_ref, xfb_ref, pod_t_ref, xloc_t_ref,
                             tw1_t_ref, tb1_ref, tw2_t_ref, tb2_ref,
                             b_ref, out_ref):
    """One N-tile of the POD-DeepONet forward.

    xfa_ref : (B, p_pod)      branch output, POD part          (resident)
    xfb_ref : (B, p_trk)      branch output, trunk part        (resident)
    pod_t   : (p_pod, tn)     POD basis tile, N on lanes
    xloc_t  : (d_loc, tn)     trunk input tile, N on lanes
    tw1_t   : (Ht, d_loc)     trunk layer-1 weight, transposed (resident)
    tb1     : (Ht, 1)         trunk layer-1 bias (f32)         (resident)
    tw2_t   : (p_trk, Ht)     trunk layer-2 weight, transposed (resident)
    tb2     : (p_trk, 1)      trunk layer-2 bias (f32)         (resident)
    b_ref   : (1, 1)  SMEM    scalar bias self.b
    out_ref : (B, tn)         output tile
    """
    f32 = jnp.float32

    # ---- trunk FNN on the transposed tile (all lane-dense, f32 accumulate) --
    h = jnp.tanh(
        jnp.dot(tw1_t_ref[...], xloc_t_ref[...], preferred_element_type=f32)
        + tb1_ref[...])                                           # (Ht, tn) f32
    xl_t = jnp.tanh(
        jnp.dot(tw2_t_ref[...], h.astype(tw2_t_ref.dtype),
                preferred_element_type=f32)
        + tb2_ref[...])                                           # (p_trk, tn) f32

    # ---- einsum('bi,ni->bn', branch, concat([pod, trunk], 1)) -------------
    # concat is folded away: two standard contractions on the transposed tiles.
    out = jnp.dot(xfa_ref[...], pod_t_ref[...], preferred_element_type=f32)
    out = out + jnp.dot(xfb_ref[...], xl_t.astype(xfb_ref.dtype),
                        preferred_element_type=f32)               # (B, tn) f32

    out_ref[...] = (out + b_ref[0, 0]).astype(out_ref.dtype)


@functools.partial(jax.jit, static_argnames=("block_n", "compute_dtype"))
def pod_deeponet_forward(x_func, x_loc, pod_basis, params, *,
                         block_n=512, compute_dtype=jnp.float32):
    """params = (bw1, bb1, bw2, bb2, tw1, tb1, tw2, tb2, b_scalar).

    compute_dtype: dtype of the matmul operands (use jnp.bfloat16 on v6e/v7x
    to halve HBM traffic on the POD basis; accumulation/tanh stay f32).
    """
    bw1, bb1, bw2, bb2, tw1, tb1, tw2, tb2, b = params

    B = x_func.shape[0]
    N, p_pod = pod_basis.shape
    d_loc = x_loc.shape[1]
    Ht = tw1.shape[1]
    p_trk = tw2.shape[1]

    # ---- branch MLP: independent of N -> hoisted out of the per-tile loop --
    hb = jnp.tanh(x_func.astype(jnp.float32) @ bw1 + bb1)
    x_func_out = hb @ bw2 + bb2                       # (B, p_pod + p_trk), f32
    xfa = x_func_out[:, :p_pod].astype(compute_dtype)  # (B, p_pod)
    xfb = x_func_out[:, p_pod:].astype(compute_dtype)  # (B, p_trk)

    # ---- transpose so N is the lane axis; cast matmul operands -------------
    pod_t = pod_basis.T.astype(compute_dtype)         # (p_pod, N)
    xloc_t = x_loc.T.astype(compute_dtype)            # (d_loc, N)
    tw1_t = tw1.T.astype(compute_dtype)               # (Ht, d_loc)
    tw2_t = tw2.T.astype(compute_dtype)               # (p_trk, Ht)
    tb1_c = jnp.reshape(tb1, (Ht, 1)).astype(jnp.float32)
    tb2_c = jnp.reshape(tb2, (p_trk, 1)).astype(jnp.float32)
    b_smem = jnp.reshape(b, (1, 1)).astype(jnp.float32)

    # ---- pick a lane-dense tile and pad N up to a multiple of it -----------
    block_n = _round_up(int(block_n), 128)
    tn = min(block_n, _round_up(N, 128))              # multiple of 128
    n_pad = _round_up(N, tn)
    if n_pad != N:
        pod_t = jnp.pad(pod_t, ((0, 0), (0, n_pad - N)))
        xloc_t = jnp.pad(xloc_t, ((0, 0), (0, n_pad - N)))
    grid = (n_pad // tn,)

    itemsize = jnp.dtype(compute_dtype).itemsize
    cost = pl.CostEstimate(
        flops=2 * n_pad * (Ht * d_loc + p_trk * Ht + B * p_pod + B * p_trk),
        transcendentals=n_pad * (Ht + p_trk),
        bytes_accessed=(p_pod * n_pad * itemsize          # POD basis
                        + d_loc * n_pad * itemsize        # trunk input
                        + B * n_pad * 4                   # output
                        + (B * (p_pod + p_trk)
                           + Ht * d_loc + p_trk * Ht) * itemsize
                        + (Ht + p_trk + 1) * 4),
    )

    grid_spec = pltpu.PrefetchScalarGridSpec(
        num_scalar_prefetch=0,
        grid=grid,
        in_specs=[
            pl.BlockSpec((B, p_pod), lambda j: (0, 0)),    # xfa   (resident)
            pl.BlockSpec((B, p_trk), lambda j: (0, 0)),    # xfb   (resident)
            pl.BlockSpec((p_pod, tn), lambda j: (0, j)),   # pod_t tile
            pl.BlockSpec((d_loc, tn), lambda j: (0, j)),   # xloc_t tile
            pl.BlockSpec((Ht, d_loc), lambda j: (0, 0)),   # tw1_t (resident)
            pl.BlockSpec((Ht, 1), lambda j: (0, 0)),       # tb1   (resident)
            pl.BlockSpec((p_trk, Ht), lambda j: (0, 0)),   # tw2_t (resident)
            pl.BlockSpec((p_trk, 1), lambda j: (0, 0)),    # tb2   (resident)
            pl.BlockSpec((1, 1), lambda j: (0, 0),
                         memory_space=pltpu.MemorySpace.SMEM),  # scalar b
        ],
        out_specs=pl.BlockSpec((B, tn), lambda j: (0, j)),
    )

    out_pad = pl.pallas_call(
        pod_deeponet_tile_kernel,
        out_shape=jax.ShapeDtypeStruct((B, n_pad), jnp.float32),
        grid_spec=grid_spec,
        compiler_params=pltpu.CompilerParams(
            # N-tiles are independent -> shard across both TCs on v7x.
            dimension_semantics=("parallel",),
            # Tiles here are tiny (< 1 MiB double-buffered); 32 MiB is the
            # default scoped limit on v6e/v7x and safe on v5e.
            vmem_limit_bytes=32 * 1024 * 1024,
        ),
        cost_estimate=cost,
    )(xfa, xfb, pod_t, xloc_t, tw1_t, tb1_c, tw2_t, tb2_c, b_smem)

    return out_pad[:, :N]


def reference_forward(x_func, x_loc, pod_basis, params):
    """Plain-JAX transcription of PODDeepONet.forward (trunk is not None)."""
    bw1, bb1, bw2, bb2, tw1, tb1, tw2, tb2, b = params
    act = jnp.tanh
    h = act(x_func @ bw1 + bb1)
    xf = h @ bw2 + bb2                      # branch(x_func)
    t = act(x_loc @ tw1 + tb1)
    xl = act(t @ tw2 + tb2)                 # activation(trunk(x_loc))
    basis = jnp.concatenate([pod_basis, xl], axis=1)
    return jnp.einsum('bi,ni->bn', xf, basis) + b


if __name__ == "__main__":
    # Small shapes consistent with the module:
    #   branch_layers = [16, 32, 24], trunk_layers = [2, 32, 8], p_pod = 16
    #   (24 = 16 + 8 so concat([pod_basis, trunk_out], 1) matches branch width)
    B, in_func = 4, 16
    Hb, p = 32, 24
    N, d_loc = 200, 2          # N is deliberately not a multiple of 128
    Ht, p_trk = 32, 8
    p_pod = p - p_trk          # 16

    key = jax.random.PRNGKey(0)
    ks = jax.random.split(key, 12)

    # deterministic synthetic parameters (weights stored as (in, out))
    bw1 = 0.1 * jax.random.normal(ks[0], (in_func, Hb), jnp.float32)
    bb1 = 0.1 * jax.random.normal(ks[1], (1, Hb), jnp.float32)
    bw2 = 0.1 * jax.random.normal(ks[2], (Hb, p), jnp.float32)
    bb2 = 0.1 * jax.random.normal(ks[3], (1, p), jnp.float32)
    tw1 = 0.1 * jax.random.normal(ks[4], (d_loc, Ht), jnp.float32)
    tb1 = 0.1 * jax.random.normal(ks[5], (1, Ht), jnp.float32)
    tw2 = 0.1 * jax.random.normal(ks[6], (Ht, p_trk), jnp.float32)
    tb2 = 0.1 * jax.random.normal(ks[7], (1, p_trk), jnp.float32)
    b_scalar = jnp.float32(0.25)            # the Parameter self.b
    params = (bw1, bb1, bw2, bb2, tw1, tb1, tw2, tb2, b_scalar)

    # inputs, mimicking the PyTorch tuple x = (x_func, x_loc, pod_basis)
    # where the forward indexes x[1][0] and x[2][0].
    x_func = jax.random.normal(ks[8], (B, in_func), jnp.float32)
    x_loc_batched = jax.random.normal(ks[9], (1, N, d_loc), jnp.float32)
    pod_basis_batched = jax.random.normal(ks[10], (1, N, p_pod), jnp.float32)
    x = (x_func, x_loc_batched, pod_basis_batched)

    ref = reference_forward(x[0], x[1][0], x[2][0], params)

    # f32 path (works on v5e/v6e/v7x); block_n=128 -> multi-tile grid + padding.
    out = pod_deeponet_forward(x[0], x[1][0], x[2][0], params,
                               block_n=128, compute_dtype=jnp.float32)
    out = jax.block_until_ready(out)
    assert out.shape == (B, N)
    assert jnp.allclose(out, ref, atol=1e-4, rtol=1e-4), "f32 mismatch vs reference"

    # bf16 operand path (HBM-bytes win on v6e/v7x; f32 accumulate/tanh kept).
    out_bf16 = pod_deeponet_forward(x[0], x[1][0], x[2][0], params,
                                    block_n=128, compute_dtype=jnp.bfloat16)
    out_bf16 = jax.block_until_ready(out_bf16)
    assert jnp.allclose(out_bf16, ref, atol=1e-1, rtol=1e-1), "bf16 mismatch vs reference"

    print("KERNEL_OK")
</pallas_src>

<mosaic_0001>
module attributes {stable_mosaic.version = 11 : i64} {
  func.func @pod_deeponet_tile_kernel(%arg0: i32, %arg1: memref<4x16xf32, #tpu.memory_space<vmem>>, %arg2: memref<4x8xf32, #tpu.memory_space<vmem>>, %arg3: memref<16x128xf32, #tpu.memory_space<vmem>>, %arg4: memref<2x128xf32, #tpu.memory_space<vmem>>, %arg5: memref<32x2xf32, #tpu.memory_space<vmem>>, %arg6: memref<32x1xf32, #tpu.memory_space<vmem>>, %arg7: memref<8x32xf32, #tpu.memory_space<vmem>>, %arg8: memref<8x1xf32, #tpu.memory_space<vmem>>, %arg9: memref<1x1xf32, #tpu.memory_space<smem>>, %arg10: memref<4x128xf32, #tpu.memory_space<vmem>>) attributes {dimension_semantics = [#tpu.dimension_semantics<parallel>], iteration_bounds = array<i64: 2>, scalar_prefetch = 0 : i64, scratch_operands = 0 : i64, tpu.core_type = #tpu.core_type<tc>, window_params = [{pipeline_mode = #tpu.pipeline_mode<synchronous>, transform_indices = @transform_0, window_bounds = array<i64: 4, 16>}, {pipeline_mode = #tpu.pipeline_mode<synchronous>, transform_indices = @transform_1, window_bounds = array<i64: 4, 8>}, {transform_indices = @transform_2, window_bounds = array<i64: 16, 128>}, {transform_indices = @transform_3, window_bounds = array<i64: 2, 128>}, {pipeline_mode = #tpu.pipeline_mode<synchronous>, transform_indices = @transform_4, window_bounds = array<i64: 32, 2>}, {pipeline_mode = #tpu.pipeline_mode<synchronous>, transform_indices = @transform_5, window_bounds = array<i64: 32, 1>}, {pipeline_mode = #tpu.pipeline_mode<synchronous>, transform_indices = @transform_6, window_bounds = array<i64: 8, 32>}, {pipeline_mode = #tpu.pipeline_mode<synchronous>, transform_indices = @transform_7, window_bounds = array<i64: 8, 1>}, {transform_indices = @transform_8, window_bounds = array<i64: 1, 1>}, {transform_indices = @transform_9, window_bounds = array<i64: 4, 128>}]} {
    %c0 = arith.constant 0 : index
    %c0_0 = arith.constant 0 : index
    %0 = vector.load %arg5[%c0, %c0_0] : memref<32x2xf32, #tpu.memory_space<vmem>>, vector<32x2xf32>
    %c0_1 = arith.constant 0 : index
    %c0_2 = arith.constant 0 : index
    %1 = vector.load %arg4[%c0_1, %c0_2] : memref<2x128xf32, #tpu.memory_space<vmem>>, vector<2x128xf32>
    %cst = arith.constant dense<0.000000e+00> : vector<32x128xf32>
    %2 = tpu.matmul %0, %1, %cst {dimension_numbers = #tpu.dot_dimension_numbers<[1], [0], [0], [1], [0, 0, 1, 1], [], []>} : vector<32x2xf32>, vector<2x128xf32>, vector<32x128xf32> -> vector<32x128xf32>
    %c0_3 = arith.constant 0 : index
    %c0_4 = arith.constant 0 : index
    %3 = vector.load %arg6[%c0_3, %c0_4] : memref<32x1xf32, #tpu.memory_space<vmem>>, vector<32x1xf32>
    %4 = vector.broadcast %3 : vector<32x1xf32> to vector<32x128xf32>
    %5 = arith.addf %2, %4 : vector<32x128xf32>
    %6 = math.tanh %5 : vector<32x128xf32>
    %c0_5 = arith.constant 0 : index
    %c0_6 = arith.constant 0 : index
    %7 = vector.load %arg7[%c0_5, %c0_6] : memref<8x32xf32, #tpu.memory_space<vmem>>, vector<8x32xf32>
    %cst_7 = arith.constant dense<0.000000e+00> : vector<8x128xf32>
    %8 = tpu.matmul %7, %6, %cst_7 {dimension_numbers = #tpu.dot_dimension_numbers<[1], [0], [0], [1], [0, 0, 1, 1], [], []>} : vector<8x32xf32>, vector<32x128xf32>, vector<8x128xf32> -> vector<8x128xf32>
    %c0_8 = arith.constant 0 : index
    %c0_9 = arith.constant 0 : index
    %9 = vector.load %arg8[%c0_8, %c0_9] : memref<8x1xf32, #tpu.memory_space<vmem>>, vector<8x1xf32>
    %10 = vector.broadcast %9 : vector<8x1xf32> to vector<8x128xf32>
    %11 = arith.addf %8, %10 : vector<8x128xf32>
    %12 = math.tanh %11 : vector<8x128xf32>
    %c0_10 = arith.constant 0 : index
    %c0_11 = arith.constant 0 : index
    %13 = vector.load %arg1[%c0_10, %c0_11] : memref<4x16xf32, #tpu.memory_space<vmem>>, vector<4x16xf32>
    %c0_12 = arith.constant 0 : index
    %c0_13 = arith.constant 0 : index
    %14 = vector.load %arg3[%c0_12, %c0_13] : memref<16x128xf32, #tpu.memory_space<vmem>>, vector<16x128xf32>
    %cst_14 = arith.constant dense<0.000000e+00> : vector<4x128xf32>
    %15 = tpu.matmul %13, %14, %cst_14 {dimension_numbers = #tpu.dot_dimension_numbers<[1], [0], [0], [1], [0, 0, 1, 1], [], []>} : vector<4x16xf32>, vector<16x128xf32>, vector<4x128xf32> -> vector<4x128xf32>
    %c0_15 = arith.constant 0 : index
    %c0_16 = arith.constant 0 : index
    %16 = vector.load %arg2[%c0_15, %c0_16] : memref<4x8xf32, #tpu.memory_space<vmem>>, vector<4x8xf32>
    %cst_17 = arith.constant dense<0.000000e+00> : vector<4x128xf32>
    %17 = tpu.matmul %16, %12, %cst_17 {dimension_numbers = #tpu.dot_dimension_numbers<[1], [0], [0], [1], [0, 0, 1, 1], [], []>} : vector<4x8xf32>, vector<8x128xf32>, vector<4x128xf32> -> vector<4x128xf32>
    %18 = arith.addf %15, %17 : vector<4x128xf32>
    %c0_18 = arith.constant 0 : index
    %c0_19 = arith.constant 0 : index
    %19 = memref.load %arg9[%c0_18, %c0_19] : memref<1x1xf32, #tpu.memory_space<smem>>
    %20 = vector.broadcast %19 : f32 to vector<4x128xf32>
    %21 = arith.addf %18, %20 : vector<4x128xf32>
    %c0_20 = arith.constant 0 : index
    %c0_21 = arith.constant 0 : index
    %22 = vector.load %arg10[%c0_20, %c0_21] : memref<4x128xf32, #tpu.memory_space<vmem>>, vector<4x128xf32>
    tpu.vector_store %arg10[%c0_20, %c0_21], %21 {strides = array<i32>} : memref<4x128xf32, #tpu.memory_space<vmem>>, vector<4x128xf32>,
    return
  }
  func.func @transform_0(%arg0: i32) -> (i32, i32) {
    %c0_i32 = arith.constant 0 : i32
    %c0_i32_0 = arith.constant 0 : i32
    %c0_i32_1 = arith.constant 0 : i32
    return %c0_i32, %c0_i32_0 : i32, i32
  }
  func.func @transform_1(%arg0: i32) -> (i32, i32) {
    %c0_i32 = arith.constant 0 : i32
    %c0_i32_0 = arith.constant 0 : i32
    %c0_i32_1 = arith.constant 0 : i32
    return %c0_i32, %c0_i32_0 : i32, i32
  }
  func.func @transform_2(%arg0: i32) -> (i32, i32) {
    %c0_i32 = arith.constant 0 : i32
    %c0_i32_0 = arith.constant 0 : i32
    return %c0_i32, %arg0 : i32, i32
  }
  func.func @transform_3(%arg0: i32) -> (i32, i32) {
    %c0_i32 = arith.constant 0 : i32
    %c0_i32_0 = arith.constant 0 : i32
    return %c0_i32, %arg0 : i32, i32
  }
  func.func @transform_4(%arg0: i32) -> (i32, i32) {
    %c0_i32 = arith.constant 0 : i32
    %c0_i32_0 = arith.constant 0 : i32
    %c0_i32_1 = arith.constant 0 : i32
    return %c0_i32, %c0_i32_0 : i32, i32
  }
  func.func @transform_5(%arg0: i32) -> (i32, i32) {
    %c0_i32 = arith.constant 0 : i32
    %c0_i32_0 = arith.constant 0 : i32
    %c0_i32_1 = arith.constant 0 : i32
    return %c0_i32, %c0_i32_0 : i32, i32
  }
  func.func @transform_6(%arg0: i32) -> (i32, i32) {
    %c0_i32 = arith.constant 0 : i32
    %c0_i32_0 = arith.constant 0 : i32
    %c0_i32_1 = arith.constant 0 : i32
    return %c0_i32, %c0_i32_0 : i32, i32
  }
  func.func @transform_7(%arg0: i32) -> (i32, i32) {
    %c0_i32 = arith.constant 0 : i32
    %c0_i32_0 = arith.constant 0 : i32
    %c0_i32_1 = arith.constant 0 : i32
    return %c0_i32, %c0_i32_0 : i32, i32
  }
  func.func @transform_8(%arg0: i32) -> (i32, i32) {
    %c0_i32 = arith.constant 0 : i32
    %c0_i32_0 = arith.constant 0 : i32
    %c0_i32_1 = arith.constant 0 : i32
    return %c0_i32, %c0_i32_0 : i32, i32
  }
  func.func @transform_9(%arg0: i32) -> (i32, i32) {
    %c0_i32 = arith.constant 0 : i32
    %c0_i32_0 = arith.constant 0 : i32
    return %c0_i32, %arg0 : i32, i32
  }
}

</mosaic_0001>

<llo_original>
// kernel: pod_deeponet_forward.1
$region0: #{pod_deeponet_forward.1}
  #allocation0 [shape = 'u32[]', space=smem, size = 0x4, offset = 0x4, fixed_abs, tag = 'smem constant byte address 0x4 - core index']
  #allocation1 [shape = 'u32[144,128]{1,0:T(1,128)}', space=vmem, size = 0x12000, scoped, tag = 'internal scratch']
  #allocation2 [shape = 'f32[1,1]{1,0:T(1,128)S(6)}', space=smem, size = 0x200, scoped, tag = 'scoped memory for pod_deeponet_forward.1']
  %s0 = inlined_call_operand.vmem [shape: f32[4,16], index: 0, kind: input, shape index: {}]
  %s1 = inlined_call_operand.vmem [shape: f32[4,8], index: 1, kind: input, shape index: {}]
  %s2 = inlined_call_operand.vmem [shape: f32[16,256], index: 2, kind: input, shape index: {}]
  %s3 = inlined_call_operand.vmem [shape: f32[2,256], index: 3, kind: input, shape index: {}]
  %s4 = inlined_call_operand.vmem [shape: f32[32,2], index: 4, kind: input, shape index: {}]
  %s5 = inlined_call_operand.vmem [shape: f32[32,1], index: 5, kind: input, shape index: {}]
  %s6 = inlined_call_operand.vmem [shape: f32[8,32], index: 6, kind: input, shape index: {}]
  %s7 = inlined_call_operand.vmem [shape: f32[8,1], index: 7, kind: input, shape index: {}]
  %s8 = inlined_call_operand.<no memory space> [shape: f32[1,1], index: 8, kind: input, shape index: {}]
  %s9 = inlined_call_operand.hbm [shape: f32[4,256], index: 9, kind: output, shape index: {}]
  %s10 = sld [smem:[#allocation0]]
  $region107: #{pod_deeponet_forward.1} parent=0
    _
  %s12 = ssub.s32 1, %s10
  %s13 = scalar_select 0, %s12, %s10
  %14 = sst [smem:[#allocation2]] %s8
  $region1: #{pod_deeponet_forward.1} parent=0
    #allocation3 [shape = 'u8[16384]{0}', space=vmem, size = 0x4000, scoped, tag = 'input window, operand 2']
    #allocation4 [shape = 'u8[4096]{0}', space=vmem, size = 0x1000, scoped, tag = 'output window, operand 0']
    #allocation5 [shape = 's32[2]{0}', space=sflag, size = 0x8, scoped, tag = 'scoped memory for pod_deeponet_forward.1']
    %15 = vsyncpa [#allocation5], 0
    %s16 = scalar_lea.sflag [#allocation5], 1
    %17 = vsyncpa %s16, 0
    loop: start=0, step=1, limit=4
    $region2: #{pod_deeponet_forward.1} parent=1 // loop_pre_header
      _
    $region3: #{pod_deeponet_forward.1} parent=1 // loop_header
      %s19 = sphi 0, %s23
      %p20 = scmp.ge.s32.totalorder %s19, 4
      %s27 = sphi 0, %s27
      %s29 = sphi 0, %s27
      %s30 = sphi 0, %s29
      %s44 = sphi 0, %s30
      %s48 = sphi 0, %s48
      %s50 = sphi 0, %s48
      %s51 = sphi 0, %s50
      %s65 = sphi 0, %s51
      %s71 = sphi 0, %s73
      %s74 = sphi 0, %s71
      %s75 = sphi 0, %s74
      %s91 = sphi 0, %s75
      %s97 = sphi 0, %s99
      %s100 = sphi 0, %s97
      %s101 = sphi 0, %s100
      %s117 = sphi 0, %s101
      %s121 = sphi 0, %s121
      %s123 = sphi 0, %s121
      %s124 = sphi 0, %s123
      %s138 = sphi 0, %s124
      %s142 = sphi 0, %s142
      %s144 = sphi 0, %s142
      %s145 = sphi 0, %s144
      %s159 = sphi 0, %s145
      %s163 = sphi 0, %s163
      %s165 = sphi 0, %s163
      %s166 = sphi 0, %s165
      %s180 = sphi 0, %s166
      %s184 = sphi 0, %s184
      %s186 = sphi 0, %s184
      %s187 = sphi 0, %s186
      %s201 = sphi 0, %s187
      %s205 = sphi 0, %s205
      %s207 = sphi 0, %s205
      %s208 = sphi 0, %s207
      %s222 = sphi 0, %s208
      %s228 = sphi 0, %s230
      %s231 = sphi 0, %s228
      %s232 = sphi 0, %s231
      %s248 = sphi 0, %s232
    $region4: #{pod_deeponet_forward.1} parent=1 // loop_header_branch
      %22 = sbr.rel (%p20) target = $region8
    $region5: #{pod_deeponet_forward.1} parent=1 // loop_body
      %s24 = ssub.s32 %s19, 1
      %s25 = ssub.s32 %s19, 2
      %s26 = sadd.s32 %s19, 1
      %s28 = sadd.s32 %s27, 1
      %p31 = scmp.eq.s32.totalorder %s19, 1
      %p32 = scmp.ne.s32.totalorder %s27, %s29
      %p33 = scmp.eq.s32.totalorder %s19, 0
      %p34 = por %p32, %p33
      %p35 = scmp.ne.s32.totalorder %s27, %s29
      %p36 = scmp.eq.s32.totalorder %s24, 1
      %p37 = por %p35, %p36
      %p38 = scmp.ne.s32.totalorder %s29, %s30
      %p39 = scmp.eq.s32.totalorder %s24, 0
      %p40 = por %p38, %p39
      %p41 = scmp.ne.s32.totalorder %s29, %s30
      %p42 = scmp.eq.s32.totalorder %s25, 1
      %p43 = por %p41, %p42
      %p45 = scmp.ne.s32.totalorder %s30, %s44
      %p46 = scmp.eq.s32.totalorder %s25, 0
      %p47 = por %p45, %p46
      %s49 = sadd.s32 %s48, 1
      %p52 = scmp.eq.s32.totalorder %s19, 1
      %p53 = scmp.ne.s32.totalorder %s48, %s50
      %p54 = scmp.eq.s32.totalorder %s19, 0
      %p55 = por %p53, %p54
      %p56 = scmp.ne.s32.totalorder %s48, %s50
      %p57 = scmp.eq.s32.totalorder %s24, 1
      %p58 = por %p56, %p57
      %p59 = scmp.ne.s32.totalorder %s50, %s51
      %p60 = scmp.eq.s32.totalorder %s24, 0
      %p61 = por %p59, %p60
      %p62 = scmp.ne.s32.totalorder %s50, %s51
      %p63 = scmp.eq.s32.totalorder %s25, 1
      %p64 = por %p62, %p63
      %p66 = scmp.ne.s32.totalorder %s51, %s65
      %p67 = scmp.eq.s32.totalorder %s25, 0
      %p68 = por %p66, %p67
      %s69 = ssub.s32 %s19, %s26
      %p70 = scmp.eq.s32.totalorder %s69, 0
      %s72 = sadd.s32 %s71, 1
      %s73 = scalar_select %p70, %s71, %s72
      %p76 = pneg %p70
      %p77 = scmp.eq.s32.totalorder %s19, 1
      %p78 = por %p76, %p77
      %p79 = scmp.ne.s32.totalorder %s71, %s74
      %p80 = scmp.eq.s32.totalorder %s19, 0
      %p81 = por %p79, %p80
      %p82 = scmp.ne.s32.totalorder %s71, %s74
      %p83 = scmp.eq.s32.totalorder %s24, 1
      %p84 = por %p82, %p83
      %p85 = scmp.ne.s32.totalorder %s74, %s75
      %p86 = scmp.eq.s32.totalorder %s24, 0
      %p87 = por %p85, %p86
      %p88 = scmp.ne.s32.totalorder %s74, %s75
      %p89 = scmp.eq.s32.totalorder %s25, 1
      %p90 = por %p88, %p89
      %p92 = scmp.ne.s32.totalorder %s75, %s91
      %p93 = scmp.eq.s32.totalorder %s25, 0
      %p94 = por %p92, %p93
      %s95 = ssub.s32 %s19, %s26
      %p96 = scmp.eq.s32.totalorder %s95, 0
      %s98 = sadd.s32 %s97, 1
      %s99 = scalar_select %p96, %s97, %s98
      %p102 = pneg %p96
      %p103 = scmp.eq.s32.totalorder %s19, 1
      %p104 = por %p102, %p103
      %p105 = scmp.ne.s32.totalorder %s97, %s100
      %p106 = scmp.eq.s32.totalorder %s19, 0
      %p107 = por %p105, %p106
      %p108 = scmp.ne.s32.totalorder %s97, %s100
      %p109 = scmp.eq.s32.totalorder %s24, 1
      %p110 = por %p108, %p109
      %p111 = scmp.ne.s32.totalorder %s100, %s101
      %p112 = scmp.eq.s32.totalorder %s24, 0
      %p113 = por %p111, %p112
      %p114 = scmp.ne.s32.totalorder %s100, %s101
      %p115 = scmp.eq.s32.totalorder %s25, 1
      %p116 = por %p114, %p115
      %p118 = scmp.ne.s32.totalorder %s101, %s117
      %p119 = scmp.eq.s32.totalorder %s25, 0
      %p120 = por %p118, %p119
      %s122 = sadd.s32 %s121, 1
      %p125 = scmp.eq.s32.totalorder %s19, 1
      %p126 = scmp.ne.s32.totalorder %s121, %s123
      %p127 = scmp.eq.s32.totalorder %s19, 0
      %p128 = por %p126, %p127
      %p129 = scmp.ne.s32.totalorder %s121, %s123
      %p130 = scmp.eq.s32.totalorder %s24, 1
      %p131 = por %p129, %p130
      %p132 = scmp.ne.s32.totalorder %s123, %s124
      %p133 = scmp.eq.s32.totalorder %s24, 0
      %p134 = por %p132, %p133
      %p135 = scmp.ne.s32.totalorder %s123, %s124
      %p136 = scmp.eq.s32.totalorder %s25, 1
      %p137 = por %p135, %p136
      %p139 = scmp.ne.s32.totalorder %s124, %s138
      %p140 = scmp.eq.s32.totalorder %s25, 0
      %p141 = por %p139, %p140
      %s143 = sadd.s32 %s142, 1
      %p146 = scmp.eq.s32.totalorder %s19, 1
      %p147 = scmp.ne.s32.totalorder %s142, %s144
      %p148 = scmp.eq.s32.totalorder %s19, 0
      %p149 = por %p147, %p148
      %p150 = scmp.ne.s32.totalorder %s142, %s144
      %p151 = scmp.eq.s32.totalorder %s24, 1
      %p152 = por %p150, %p151
      %p153 = scmp.ne.s32.totalorder %s144, %s145
      %p154 = scmp.eq.s32.totalorder %s24, 0
      %p155 = por %p153, %p154
      %p156 = scmp.ne.s32.totalorder %s144, %s145
      %p157 = scmp.eq.s32.totalorder %s25, 1
      %p158 = por %p156, %p157
      %p160 = scmp.ne.s32.totalorder %s145, %s159
      %p161 = scmp.eq.s32.totalorder %s25, 0
      %p162 = por %p160, %p161
      %s164 = sadd.s32 %s163, 1
      %p167 = scmp.eq.s32.totalorder %s19, 1
      %p168 = scmp.ne.s32.totalorder %s163, %s165
      %p169 = scmp.eq.s32.totalorder %s19, 0
      %p170 = por %p168, %p169
      %p171 = scmp.ne.s32.totalorder %s163, %s165
      %p172 = scmp.eq.s32.totalorder %s24, 1
      %p173 = por %p171, %p172
      %p174 = scmp.ne.s32.totalorder %s165, %s166
      %p175 = scmp.eq.s32.totalorder %s24, 0
      %p176 = por %p174, %p175
      %p177 = scmp.ne.s32.totalorder %s165, %s166
      %p178 = scmp.eq.s32.totalorder %s25, 1
      %p179 = por %p177, %p178
      %p181 = scmp.ne.s32.totalorder %s166, %s180
      %p182 = scmp.eq.s32.totalorder %s25, 0
      %p183 = por %p181, %p182
      %s185 = sadd.s32 %s184, 1
      %p188 = scmp.eq.s32.totalorder %s19, 1
      %p189 = scmp.ne.s32.totalorder %s184, %s186
      %p190 = scmp.eq.s32.totalorder %s19, 0
      %p191 = por %p189, %p190
      %p192 = scmp.ne.s32.totalorder %s184, %s186
      %p193 = scmp.eq.s32.totalorder %s24, 1
      %p194 = por %p192, %p193
      %p195 = scmp.ne.s32.totalorder %s186, %s187
      %p196 = scmp.eq.s32.totalorder %s24, 0
      %p197 = por %p195, %p196
      %p198 = scmp.ne.s32.totalorder %s186, %s187
      %p199 = scmp.eq.s32.totalorder %s25, 1
      %p200 = por %p198, %p199
      %p202 = scmp.ne.s32.totalorder %s187, %s201
      %p203 = scmp.eq.s32.totalorder %s25, 0
      %p204 = por %p202, %p203
      %s206 = sadd.s32 %s205, 1
      %p209 = scmp.eq.s32.totalorder %s19, 1
      %p210 = scmp.ne.s32.totalorder %s205, %s207
      %p211 = scmp.eq.s32.totalorder %s19, 0
      %p212 = por %p210, %p211
      %p213 = scmp.ne.s32.totalorder %s205, %s207
      %p214 = scmp.eq.s32.totalorder %s24, 1
      %p215 = por %p213, %p214
      %p216 = scmp.ne.s32.totalorder %s207, %s208
      %p217 = scmp.eq.s32.totalorder %s24, 0
      %p218 = por %p216, %p217
      %p219 = scmp.ne.s32.totalorder %s207, %s208
      %p220 = scmp.eq.s32.totalorder %s25, 1
      %p221 = por %p219, %p220
      %p223 = scmp.ne.s32.totalorder %s208, %s222
      %p224 = scmp.eq.s32.totalorder %s25, 0
      %p225 = por %p223, %p224
      %s226 = ssub.s32 %s19, %s26
      %p227 = scmp.eq.s32.totalorder %s226, 0
      %s229 = sadd.s32 %s228, 1
      %s230 = scalar_select %p227, %s228, %s229
      %p233 = pneg %p227
      %p234 = scmp.eq.s32.totalorder %s19, 1
      %p235 = por %p233, %p234
      %p236 = scmp.ne.s32.totalorder %s228, %s231
      %p237 = scmp.eq.s32.totalorder %s19, 0
      %p238 = por %p236, %p237
      %p239 = scmp.ne.s32.totalorder %s228, %s231
      %p240 = scmp.eq.s32.totalorder %s24, 1
      %p241 = por %p239, %p240
      %p242 = scmp.ne.s32.totalorder %s231, %s232
      %p243 = scmp.eq.s32.totalorder %s24, 0
      %p244 = por %p242, %p243
      %p245 = scmp.ne.s32.totalorder %s231, %s232
      %p246 = scmp.eq.s32.totalorder %s25, 1
      %p247 = por %p245, %p246
      %p249 = scmp.ne.s32.totalorder %s232, %s248
      %p250 = scmp.eq.s32.totalorder %s25, 0
      %p251 = por %p249, %p250
      %p252 = scmp.le.s32.totalorder 1, %s19
      %p253 = scmp.lt.s32.totalorder %s19, 3
      %p254 = pnand %p252, %p253
      %p255 = pneg %p254
      // Predicated region
      $region9: #{pod_deeponet_forward.1} parent=5 // pred_check
        _
      $region10: #{pod_deeponet_forward.1} parent=5 // pred_check_branch
        %257 = sbr.rel (%p254) target = $region12
      $region11: #{pod_deeponet_forward.1} parent=5 // pred_region
        %s258 = ssub.s32 %s19, 1
        // Predicated region
        $region13: #{pod_deeponet_forward.1} parent=11 // pred_check
          %p259 = pneg %p40
        $region14: #{pod_deeponet_forward.1} parent=11 // pred_check_branch
          %261 = sbr.rel (%p259) target = $region16
        $region15: #{pod_deeponet_forward.1} parent=11 // pred_region
          _
        $region16: #{pod_deeponet_forward.1} parent=11 // pred_fallthru
          _
        // Predicated region
        $region17: #{pod_deeponet_forward.1} parent=11 // pred_check
          %p262 = pneg %p61
        $region18: #{pod_deeponet_forward.1} parent=11 // pred_check_branch
          %264 = sbr.rel (%p262) target = $region20
        $region19: #{pod_deeponet_forward.1} parent=11 // pred_region
          _
        $region20: #{pod_deeponet_forward.1} parent=11 // pred_fallthru
          _
        // Predicated region
        $region21: #{pod_deeponet_forward.1} parent=11 // pred_check
          %p265 = pneg %p134
        $region22: #{pod_deeponet_forward.1} parent=11 // pred_check_branch
          %267 = sbr.rel (%p265) target = $region24
        $region23: #{pod_deeponet_forward.1} parent=11 // pred_region
          _
        $region24: #{pod_deeponet_forward.1} parent=11 // pred_fallthru
          _
        // Predicated region
        $region25: #{pod_deeponet_forward.1} parent=11 // pred_check
          %p268 = pneg %p155
        $region26: #{pod_deeponet_forward.1} parent=11 // pred_check_branch
          %270 = sbr.rel (%p268) target = $region28
        $region27: #{pod_deeponet_forward.1} parent=11 // pred_region
          _
        $region28: #{pod_deeponet_forward.1} parent=11 // pred_fallthru
          _
        // Predicated region
        $region29: #{pod_deeponet_forward.1} parent=11 // pred_check
          %p271 = pneg %p176
        $region30: #{pod_deeponet_forward.1} parent=11 // pred_check_branch
          %273 = sbr.rel (%p271) target = $region32
        $region31: #{pod_deeponet_forward.1} parent=11 // pred_region
          _
        $region32: #{pod_deeponet_forward.1} parent=11 // pred_fallthru
          _
        // Predicated region
        $region33: #{pod_deeponet_forward.1} parent=11 // pred_check
          %p274 = pneg %p197
        $region34: #{pod_deeponet_forward.1} parent=11 // pred_check_branch
          %276 = sbr.rel (%p274) target = $region36
        $region35: #{pod_deeponet_forward.1} parent=11 // pred_region
          _
        $region36: #{pod_deeponet_forward.1} parent=11 // pred_fallthru
          _
        // Predicated region
        $region37: #{pod_deeponet_forward.1} parent=11 // pred_check
          %p277 = pneg %p218
        $region38: #{pod_deeponet_forward.1} parent=11 // pred_check_branch
          %279 = sbr.rel (%p277) target = $region40
        $region39: #{pod_deeponet_forward.1} parent=11 // pred_region
          _
        $region40: #{pod_deeponet_forward.1} parent=11 // pred_fallthru
          _
      $region12: #{pod_deeponet_forward.1} parent=5 // pred_fallthru
        _
      %p280 = scmp.lt.s32.totalorder %s19, 2
      // Predicated region
      $region41: #{pod_deeponet_forward.1} parent=5 // pred_check
        %p281 = pneg %p280
      $region42: #{pod_deeponet_forward.1} parent=5 // pred_check_branch
        %283 = sbr.rel (%p281) target = $region44
      $region43: #{pod_deeponet_forward.1} parent=5 // pred_region
        // Predicated region
        $region45: #{pod_deeponet_forward.1} parent=43 // pred_check
          %p284 = pneg %p81
        $region46: #{pod_deeponet_forward.1} parent=43 // pred_check_branch
          %286 = sbr.rel (%p284) target = $region48
        $region47: #{pod_deeponet_forward.1} parent=43 // pred_region
          %s287 = sand.u32 %s71, 1
          %s288 = sand.u32 %s71, 1
          %s289 = smul.addr %s288, 16
          %s290 = scalar_lea.vmem [#allocation3], %s289
          %s291 = smul.addr %s19, 8
          %s292 = scalar_lea.vmem %s2, %s291
          // Predicated region
          $region49: #{pod_deeponet_forward.1} parent=47 // pred_check
            _
          $region50: #{pod_deeponet_forward.1} parent=47 // pred_check_branch
            %294 = sbr.rel (0) target = $region52
          $region51: #{pod_deeponet_forward.1} parent=47 // pred_region
            // Predicated region
            $region53: #{pod_deeponet_forward.1} parent=51 // pred_check
              _
            $region54: #{pod_deeponet_forward.1} parent=51 // pred_check_branch
              %296 = sbr.rel (0) target = $region56
            $region55: #{pod_deeponet_forward.1} parent=51 // pred_region
              // Predicated region
              $region68: #{pod_deeponet_forward.1} parent=55 // pred_check
                _
              $region69: #{pod_deeponet_forward.1} parent=55 // pred_check_branch
                %314 = sbr.rel (0) target = $region71
              $region70: #{pod_deeponet_forward.1} parent=55 // pred_region
                loop: start=0, step=1, limit=1
                $region72: #{pod_deeponet_forward.1} parent=70 // loop_pre_header
                  _
                $region73: #{pod_deeponet_forward.1} parent=70 // loop_header
                  %s316 = sphi 0, %s320
                  %p317 = scmp.ge.s32.totalorder %s316, 1
                  %s321 = sphi %s292, %s292
                  %s322 = sphi %s290, %s290
                $region74: #{pod_deeponet_forward.1} parent=70 // loop_header_branch
                  %319 = sbr.rel (%p317) target = $region78
                $region75: #{pod_deeponet_forward.1} parent=70 // loop_body
                  %v323 = vld [vmem:[%s321] sm:$0xff]
                  %324 = vst [vmem:[%s322] sm:$0xff] %v323
                  %v325 = vld [vmem:[%s321 + $0x10] sm:$0xff]
                  %326 = vst [vmem:[%s322 + $0x8] sm:$0xff] %v325
                $region76: #{pod_deeponet_forward.1} parent=70 // loop_footer
                  %s320 = sadd.s32 1, %s316
                $region77: #{pod_deeponet_forward.1} parent=70 // loop_footer_branch
                  %315 = sbr.rel target = $region73
                $region78: #{pod_deeponet_forward.1} parent=70 // loop_exit
                  _
              $region71: #{pod_deeponet_forward.1} parent=55 // pred_fallthru
                _
              // Predicated region
              $region79: #{pod_deeponet_forward.1} parent=55 // pred_check
                _
              $region80: #{pod_deeponet_forward.1} parent=55 // pred_check_branch
                %328 = sbr.rel target = $region82
              $region81: #{pod_deeponet_forward.1} parent=55 // pred_region
                _
              $region82: #{pod_deeponet_forward.1} parent=55 // pred_fallthru
                _
            $region56: #{pod_deeponet_forward.1} parent=51 // pred_fallthru
              _
            // Predicated region
            $region57: #{pod_deeponet_forward.1} parent=51 // pred_check
              _
            $region58: #{pod_deeponet_forward.1} parent=51 // pred_check_branch
              %298 = sbr.rel target = $region60
            $region59: #{pod_deeponet_forward.1} parent=51 // pred_region
              %s300 = ssub.s32 256, 1
              loop: start=0, step=1, limit=1
              $region61: #{pod_deeponet_forward.1} parent=59 // loop_pre_header
                _
              $region62: #{pod_deeponet_forward.1} parent=59 // loop_header
                %s302 = sphi 0, %s306
                %p303 = scmp.ge.s32.totalorder %s302, 1
                %s307 = sphi %s292, %s292
                %s308 = sphi %s290, %s290
              $region63: #{pod_deeponet_forward.1} parent=59 // loop_header_branch
                %305 = sbr.rel (%p303) target = $region67
              $region64: #{pod_deeponet_forward.1} parent=59 // loop_body
                %v309 = vld [vmem:[%s307] sm:%s300]
                %310 = vst [vmem:[%s308] sm:%s300] %v309
                %v311 = vld [vmem:[%s307 + $0x10] sm:%s300]
                %312 = vst [vmem:[%s308 + $0x8] sm:%s300] %v311
              $region65: #{pod_deeponet_forward.1} parent=59 // loop_footer
                %s306 = sadd.s32 1, %s302
              $region66: #{pod_deeponet_forward.1} parent=59 // loop_footer_branch
                %301 = sbr.rel target = $region62
              $region67: #{pod_deeponet_forward.1} parent=59 // loop_exit
                _
            $region60: #{pod_deeponet_forward.1} parent=51 // pred_fallthru
              _
          $region52: #{pod_deeponet_forward.1} parent=47 // pred_fallthru
            _
          %329 = vnop
        $region48: #{pod_deeponet_forward.1} parent=43 // pred_fallthru
          _
        // Predicated region
        $region83: #{pod_deeponet_forward.1} parent=43 // pred_check
          %p330 = pneg %p107
        $region84: #{pod_deeponet_forward.1} parent=43 // pred_check_branch
          %332 = sbr.rel (%p330) target = $region86
        $region85: #{pod_deeponet_forward.1} parent=43 // pred_region
          %p333 = scmp.lt.s32.totalorder %s19, 1
          %s334 = scalar_select %p333, %s19, 1
          %s335 = smul.addr %s334, 2
          %s336 = scalar_lea.vmem %s3, %s335
        $region86: #{pod_deeponet_forward.1} parent=43 // pred_fallthru
          _
      $region44: #{pod_deeponet_forward.1} parent=5 // pred_fallthru
        _
      %p337 = scmp.le.s32.totalorder 1, %s19
      %p338 = scmp.lt.s32.totalorder %s19, 3
      %p339 = pnand %p337, %p338
      %p340 = pneg %p339
      // Predicated region
      $region87: #{pod_deeponet_forward.1} parent=5 // pred_check
        _
      $region88: #{pod_deeponet_forward.1} parent=5 // pred_check_branch
        %342 = sbr.rel (%p339) target = $region90
      $region89: #{pod_deeponet_forward.1} parent=5 // pred_region
        %s343 = ssub.s32 %s19, 1
        %s344 = sand.u32 %s74, 1
        %s345 = sand.u32 %s74, 1
        %s346 = smul.addr %s345, 16
        %s347 = scalar_lea.vmem [#allocation3], %s346
        // Predicated region
        $region91: #{pod_deeponet_forward.1} parent=89 // pred_check
          %p348 = pneg %p87
        $region92: #{pod_deeponet_forward.1} parent=89 // pred_check_branch
          %350 = sbr.rel (%p348) target = $region94
        $region93: #{pod_deeponet_forward.1} parent=89 // pred_region
          _
        $region94: #{pod_deeponet_forward.1} parent=89 // pred_fallthru
          _
        %p351 = pneg %p40
        %p352 = pneg %p37
        %p353 = pneg %p61
        %p354 = pneg %p58
        %s355 = sand.u32 %s74, 1
        %s356 = sand.u32 %s74, 1
        %s357 = smul.addr %s356, 16
        %s358 = scalar_lea.vmem [#allocation3], %s357
        %p359 = pneg %p87
        %p360 = pneg %p84
        %p361 = scmp.lt.s32.totalorder %s24, 1
        %s362 = scalar_select %p361, %s24, 1
        %s363 = smul.addr %s362, 2
        %s364 = scalar_lea.vmem %s3, %s363
        %p365 = pneg %p113
        %p366 = pneg %p110
        %p367 = pneg %p134
        %p368 = pneg %p131
        %p369 = pneg %p155
        %p370 = pneg %p152
        %p371 = pneg %p176
        %p372 = pneg %p173
        %p373 = pneg %p197
        %p374 = pneg %p194
        %p375 = pneg %p218
        %p376 = pneg %p215
        %p377 = pneg %p244
        %p378 = pneg %p241
        %s379 = sand.u32 %s231, 1
        %s380 = scalar_lea.sflag [#allocation5], %s379
        %s381 = sand.u32 %s231, 1
        %s382 = smul.addr %s381, 4
        %s383 = scalar_lea.vmem [#allocation4], %s382
        %p384 = scmp.lt.s32.totalorder %s24, 1
        %s385 = scalar_select %p384, %s24, 1
        %s386 = smul.addr %s385, 2
        %s387 = scalar_lea.vmem %s3, %s386
        %v388 = vld [vmem:[%s4] sm:$0xff]
        %v389 = vld [vmem:[%s4 + $0x8] sm:$0xff]
        %v390 = vld [vmem:[%s4 + $0x10] sm:$0xff]
        %v391 = vld [vmem:[%s4 + $0x18] sm:$0xff]
        %v392 = vld [vmem:[%s387] sm:$0x3]
        %v393 = vld [vmem:[%s5] sm:$0xff]
        %v394 = vld [vmem:[%s5 + $0x8] sm:$0xff]
        %v395 = vld [vmem:[%s5 + $0x10] sm:$0xff]
        %v396 = vld [vmem:[%s5 + $0x18] sm:$0xff]
        %398 = vset.pattern.permute.xlu0 0
        %399 = vperm.xlu0 %398, %v393
        %v400 = vpop.permute.xlu0 %399
        %403 = vset.pattern.permute.xlu0 0
        %404 = vperm.xlu0 %403, %v394
        %v405 = vpop.permute.xlu0 %404
        %408 = vset.pattern.permute.xlu0 0
        %409 = vperm.xlu0 %408, %v395
        %v410 = vpop.permute.xlu0 %409
        %413 = vset.pattern.permute.xlu0 0
        %414 = vperm.xlu0 %413, %v396
        %v415 = vpop.permute.xlu0 %414
        %vm417 = vcmask 15360
        %v419 = vsel %vm417, %v388, 0
        %v422 = vsel %vm417, %v389, 0
        %v425 = vsel %vm417, %v390, 0
        %v428 = vsel %vm417, %v391, 0
        %vm430 = vcmask 1041408
        %v432 = vsel %vm430, %v392, 0
        %434 = vmatprep.subr.mxu0 0.0
        %435 = vmatpush1.msra.mxu0 0.0
        %436 = vmatprep.subr.mxu0 0.0
        %437 = vmatpush1.msra.mxu0 0.0
        %438 = vmatprep.subr.mxu0 0.0
        %439 = vmatpush1.msra.mxu0 0.0
        %440 = vmatprep.subr.mxu0 0.0
        %441 = vmatpush1.msra.mxu0 0.0
        %442 = vmatprep.subr.mxu0 0.0
        %443 = vmatpush1.msra.mxu0 0.0
        %444 = vmatprep.subr.mxu0 0.0
        %445 = vmatpush1.msra.mxu0 0.0
        %446 = vmatprep.subr.mxu0 0.0
        %447 = vmatpush1.msra.mxu0 0.0
        %448 = vmatprep.subr.mxu0 0.0
        %449 = vmatpush1.msra.mxu0 0.0
        %450 = vmatprep.subr.mxu0 0.0
        %451 = vmatpush1.msra.mxu0 0.0
        %452 = vmatprep.subr.mxu0 0.0
        %453 = vmatpush1.msra.mxu0 0.0
        %454 = vmatprep.subr.mxu0 0.0
        %455 = vmatpush1.msra.mxu0 0.0
        %456 = vmatprep.subr.mxu0 0.0
        %457 = vmatpush1.msra.mxu0 0.0
        %458 = vmatprep.subr.mxu0 0.0
        %459 = vmatpush1.msra.mxu0 0.0
        %460 = vmatprep.subr.mxu0 0.0
        %461 = vmatpush1.msra.mxu0 0.0
        %462 = vmatprep.subr.mxu0 0.0
        %463 = vmatpush1.msra.mxu0 0.0
        %464 = vmatprep.subr.mxu0 0.0
        %465 = vmatpush1.msra.mxu0 %v432
        %466 = vmatprep.subr.mxu0 0.0
        %467 = vmatpush2.msra.mxu0 0.0
        %468 = vmatprep.subr.mxu0 0.0
        %469 = vmatpush2.msra.mxu0 0.0
        %470 = vmatprep.subr.mxu0 0.0
        %471 = vmatpush2.msra.mxu0 0.0
        %472 = vmatprep.subr.mxu0 0.0
        %473 = vmatpush2.msra.mxu0 0.0
        %474 = vmatprep.subr.mxu0 0.0
        %475 = vmatpush2.msra.mxu0 0.0
        %476 = vmatprep.subr.mxu0 0.0
        %477 = vmatpush2.msra.mxu0 0.0
        %478 = vmatprep.subr.mxu0 0.0
        %479 = vmatpush2.msra.mxu0 0.0
        %480 = vmatprep.subr.mxu0 0.0
        %481 = vmatpush2.msra.mxu0 0.0
        %482 = vmatprep.subr.mxu0 0.0
        %483 = vmatpush2.msra.mxu0 0.0
        %484 = vmatprep.subr.mxu0 0.0
        %485 = vmatpush2.msra.mxu0 0.0
        %486 = vmatprep.subr.mxu0 0.0
        %487 = vmatpush2.msra.mxu0 0.0
        %488 = vmatprep.subr.mxu0 0.0
        %489 = vmatpush2.msra.mxu0 0.0
        %490 = vmatprep.subr.mxu0 0.0
        %491 = vmatpush2.msra.mxu0 0.0
        %492 = vmatprep.subr.mxu0 0.0
        %493 = vmatpush2.msra.mxu0 0.0
        %494 = vmatprep.subr.mxu0 0.0
        %495 = vmatpush2.msra.mxu0 0.0
        %496 = vmatprep.subr.mxu0 0.0
        %497 = vmatpush2.msra.mxu0 0.0
        %498 = vmatprep.mubr.f32.mxu0 0.0
        %499 = vmatmul.mubr.f32.gmra.mxu0 %v419
        %v500 = vpop.f32.mrf.mxu0
        %v501 = vadd.f32 %v400, %v500
        %v502 = vpop.f32.mrf.mxu0
        %503 = vmatprep.mubr.f32.mxu0 0.0
        %504 = vmatmul.mubr.f32.gmra.mxu0 %v422
        %v505 = vpop.f32.mrf.mxu0
        %v506 = vadd.f32 %v405, %v505
        %v507 = vpop.f32.mrf.mxu0
        %508 = vmatprep.mubr.f32.mxu0 0.0
        %509 = vmatmul.mubr.f32.gmra.mxu0 %v425
        %v510 = vpop.f32.mrf.mxu0
        %v511 = vadd.f32 %v410, %v510
        %v512 = vpop.f32.mrf.mxu0
        %513 = vmatprep.mubr.f32.mxu0 0.0
        %514 = vmatmul.mubr.f32.gmra.mxu0 %v428
        %v515 = vpop.f32.mrf.mxu0
        %v516 = vadd.f32 %v415, %v515
        %v517 = vpop.f32.mrf.mxu0
        %518 = vdwg.mxu0
        %v519 = vtanh.pop %v501
        %v520 = vtanh.pop %v506
        %v521 = vtanh.pop %v511
        %v522 = vtanh.pop %v516
        %v523 = vld [vmem:[%s6] sm:$0xff]
        %v524 = vld [vmem:[%s7] sm:$0xff]
        %526 = vset.pattern.permute.xlu0 0
        %527 = vperm.xlu0 %526, %v524
        %v528 = vpop.permute.xlu0 %527
        %vm530 = vcmask 261120
        %v532 = vsel %vm530, %v523, 0
        %534 = vmatprep.subr.mxu0 0.0
        %535 = vmatpush1.msra.mxu0 0.0
        %536 = vmatprep.subr.mxu0 0.0
        %537 = vmatpush1.msra.mxu0 0.0
        %538 = vmatprep.subr.mxu0 0.0
        %539 = vmatpush1.msra.mxu0 0.0
        %540 = vmatprep.subr.mxu0 0.0
        %541 = vmatpush1.msra.mxu0 0.0
        %542 = vmatprep.subr.mxu0 0.0
        %543 = vmatpush1.msra.mxu0 0.0
        %544 = vmatprep.subr.mxu0 0.0
        %545 = vmatpush1.msra.mxu0 0.0
        %546 = vmatprep.subr.mxu0 0.0
        %547 = vmatpush1.msra.mxu0 0.0
        %548 = vmatprep.subr.mxu0 0.0
        %549 = vmatpush1.msra.mxu0 0.0
        %550 = vmatprep.subr.mxu0 0.0
        %551 = vmatpush1.msra.mxu0 0.0
        %552 = vmatprep.subr.mxu0 0.0
        %553 = vmatpush1.msra.mxu0 0.0
        %554 = vmatprep.subr.mxu0 0.0
        %555 = vmatpush1.msra.mxu0 0.0
        %556 = vmatprep.subr.mxu0 0.0
        %557 = vmatpush1.msra.mxu0 0.0
        %558 = vmatprep.subr.mxu0 0.0
        %559 = vmatpush1.msra.mxu0 %v522
        %560 = vmatprep.subr.mxu0 0.0
        %561 = vmatpush1.msra.mxu0 %v521
        %562 = vmatprep.subr.mxu0 0.0
        %563 = vmatpush1.msra.mxu0 %v520
        %564 = vmatprep.subr.mxu0 0.0
        %565 = vmatpush1.msra.mxu0 %v519
        %566 = vmatprep.subr.mxu0 0.0
        %567 = vmatpush2.msra.mxu0 0.0
        %568 = vmatprep.subr.mxu0 0.0
        %569 = vmatpush2.msra.mxu0 0.0
        %570 = vmatprep.subr.mxu0 0.0
        %571 = vmatpush2.msra.mxu0 0.0
        %572 = vmatprep.subr.mxu0 0.0
        %573 = vmatpush2.msra.mxu0 0.0
        %574 = vmatprep.subr.mxu0 0.0
        %575 = vmatpush2.msra.mxu0 0.0
        %576 = vmatprep.subr.mxu0 0.0
        %577 = vmatpush2.msra.mxu0 0.0
        %578 = vmatprep.subr.mxu0 0.0
        %579 = vmatpush2.msra.mxu0 0.0
        %580 = vmatprep.subr.mxu0 0.0
        %581 = vmatpush2.msra.mxu0 0.0
        %582 = vmatprep.subr.mxu0 0.0
        %583 = vmatpush2.msra.mxu0 0.0
        %584 = vmatprep.subr.mxu0 0.0
        %585 = vmatpush2.msra.mxu0 0.0
        %586 = vmatprep.subr.mxu0 0.0
        %587 = vmatpush2.msra.mxu0 0.0
        %588 = vmatprep.subr.mxu0 0.0
        %589 = vmatpush2.msra.mxu0 0.0
        %590 = vmatprep.subr.mxu0 0.0
        %591 = vmatpush2.msra.mxu0 0.0
        %592 = vmatprep.subr.mxu0 0.0
        %593 = vmatpush2.msra.mxu0 0.0
        %594 = vmatprep.subr.mxu0 0.0
        %595 = vmatpush2.msra.mxu0 0.0
        %596 = vmatprep.subr.mxu0 0.0
        %597 = vmatpush2.msra.mxu0 0.0
        %598 = vmatprep.mubr.f32.mxu0 0.0
        %599 = vmatmul.mubr.f32.gmra.mxu0 %v532
        %v600 = vpop.f32.mrf.mxu0
        %v601 = vadd.f32 %v528, %v600
        %v602 = vpop.f32.mrf.mxu0
        %603 = vdwg.mxu0
        %v604 = vtanh.pop %v601
        %v605 = vld [vmem:[%s0] sm:$0xf]
        %v606 = vld [vmem:[%s347] sm:$0xff]
        %v607 = vld [vmem:[%s347 + $0x8] sm:$0xff]
        %v608 = vld [vmem:[%s1] sm:$0xf]
        %vm609 = vcmask 64512
        %v611 = vsel %vm609, %v608, 0
        %613 = vmatprep.subr.mxu0 0.0
        %614 = vmatpush1.msra.mxu0 0.0
        %615 = vmatprep.subr.mxu0 0.0
        %616 = vmatpush1.msra.mxu0 0.0
        %617 = vmatprep.subr.mxu0 0.0
        %618 = vmatpush1.msra.mxu0 0.0
        %619 = vmatprep.subr.mxu0 0.0
        %620 = vmatpush1.msra.mxu0 0.0
        %621 = vmatprep.subr.mxu0 0.0
        %622 = vmatpush1.msra.mxu0 0.0
        %623 = vmatprep.subr.mxu0 0.0
        %624 = vmatpush1.msra.mxu0 0.0
        %625 = vmatprep.subr.mxu0 0.0
        %626 = vmatpush1.msra.mxu0 0.0
        %627 = vmatprep.subr.mxu0 0.0
        %628 = vmatpush1.msra.mxu0 0.0
        %629 = vmatprep.subr.mxu0 0.0
        %630 = vmatpush1.msra.mxu0 0.0
        %631 = vmatprep.subr.mxu0 0.0
        %632 = vmatpush1.msra.mxu0 0.0
        %633 = vmatprep.subr.mxu0 0.0
        %634 = vmatpush1.msra.mxu0 0.0
        %635 = vmatprep.subr.mxu0 0.0
        %636 = vmatpush1.msra.mxu0 0.0
        %637 = vmatprep.subr.mxu0 0.0
        %638 = vmatpush1.msra.mxu0 0.0
        %639 = vmatprep.subr.mxu0 0.0
        %640 = vmatpush1.msra.mxu0 0.0
        %641 = vmatprep.subr.mxu0 0.0
        %642 = vmatpush1.msra.mxu0 0.0
        %643 = vmatprep.subr.mxu0 0.0
        %644 = vmatpush1.msra.mxu0 %v604
        %645 = vmatprep.subr.mxu0 0.0
        %646 = vmatpush2.msra.mxu0 0.0
        %647 = vmatprep.subr.mxu0 0.0
        %648 = vmatpush2.msra.mxu0 0.0
        %649 = vmatprep.subr.mxu0 0.0
        %650 = vmatpush2.msra.mxu0 0.0
        %651 = vmatprep.subr.mxu0 0.0
        %652 = vmatpush2.msra.mxu0 0.0
        %653 = vmatprep.subr.mxu0 0.0
        %654 = vmatpush2.msra.mxu0 0.0
        %655 = vmatprep.subr.mxu0 0.0
        %656 = vmatpush2.msra.mxu0 0.0
        %657 = vmatprep.subr.mxu0 0.0
        %658 = vmatpush2.msra.mxu0 0.0
        %659 = vmatprep.subr.mxu0 0.0
        %660 = vmatpush2.msra.mxu0 0.0
        %661 = vmatprep.subr.mxu0 0.0
        %662 = vmatpush2.msra.mxu0 0.0
        %663 = vmatprep.subr.mxu0 0.0
        %664 = vmatpush2.msra.mxu0 0.0
        %665 = vmatprep.subr.mxu0 0.0
        %666 = vmatpush2.msra.mxu0 0.0
        %667 = vmatprep.subr.mxu0 0.0
        %668 = vmatpush2.msra.mxu0 0.0
        %669 = vmatprep.subr.mxu0 0.0
        %670 = vmatpush2.msra.mxu0 0.0
        %671 = vmatprep.subr.mxu0 0.0
        %672 = vmatpush2.msra.mxu0 0.0
        %673 = vmatprep.subr.mxu0 0.0
        %674 = vmatpush2.msra.mxu0 0.0
        %675 = vmatprep.subr.mxu0 0.0
        %676 = vmatpush2.msra.mxu0 0.0
        %677 = vmatprep.mubr.f32.mxu0 0.0
        %678 = vmatmul.mubr.f32.gmra.mxu0 %v611
        %v679 = vpop.f32.mrf.mxu0
        %v680 = vadd.f32 0.0, %v679
        %v681 = vpop.f32.mrf.mxu0
        %682 = vdwg.mxu0
        %vm683 = vcmask 130048
        %v685 = vsel %vm683, %v605, 0
        %687 = vmatprep.subr.mxu0 0.0
        %688 = vmatpush1.msra.mxu0 0.0
        %689 = vmatprep.subr.mxu0 0.0
        %690 = vmatpush1.msra.mxu0 0.0
        %691 = vmatprep.subr.mxu0 0.0
        %692 = vmatpush1.msra.mxu0 0.0
        %693 = vmatprep.subr.mxu0 0.0
        %694 = vmatpush1.msra.mxu0 0.0
        %695 = vmatprep.subr.mxu0 0.0
        %696 = vmatpush1.msra.mxu0 0.0
        %697 = vmatprep.subr.mxu0 0.0
        %698 = vmatpush1.msra.mxu0 0.0
        %699 = vmatprep.subr.mxu0 0.0
        %700 = vmatpush1.msra.mxu0 0.0
        %701 = vmatprep.subr.mxu0 0.0
        %702 = vmatpush1.msra.mxu0 0.0
        %703 = vmatprep.subr.mxu0 0.0
        %704 = vmatpush1.msra.mxu0 0.0
        %705 = vmatprep.subr.mxu0 0.0
        %706 = vmatpush1.msra.mxu0 0.0
        %707 = vmatprep.subr.mxu0 0.0
        %708 = vmatpush1.msra.mxu0 0.0
        %709 = vmatprep.subr.mxu0 0.0
        %710 = vmatpush1.msra.mxu0 0.0
        %711 = vmatprep.subr.mxu0 0.0
        %712 = vmatpush1.msra.mxu0 0.0
        %713 = vmatprep.subr.mxu0 0.0
        %714 = vmatpush1.msra.mxu0 0.0
        %715 = vmatprep.subr.mxu0 0.0
        %716 = vmatpush1.msra.mxu0 %v607
        %717 = vmatprep.subr.mxu0 0.0
        %718 = vmatpush1.msra.mxu0 %v606
        %719 = vmatprep.subr.mxu0 0.0
        %720 = vmatpush2.msra.mxu0 0.0
        %721 = vmatprep.subr.mxu0 0.0
        %722 = vmatpush2.msra.mxu0 0.0
        %723 = vmatprep.subr.mxu0 0.0
        %724 = vmatpush2.msra.mxu0 0.0
        %725 = vmatprep.subr.mxu0 0.0
        %726 = vmatpush2.msra.mxu0 0.0
        %727 = vmatprep.subr.mxu0 0.0
        %728 = vmatpush2.msra.mxu0 0.0
        %729 = vmatprep.subr.mxu0 0.0
        %730 = vmatpush2.msra.mxu0 0.0
        %731 = vmatprep.subr.mxu0 0.0
        %732 = vmatpush2.msra.mxu0 0.0
        %733 = vmatprep.subr.mxu0 0.0
        %734 = vmatpush2.msra.mxu0 0.0
        %735 = vmatprep.subr.mxu0 0.0
        %736 = vmatpush2.msra.mxu0 0.0
        %737 = vmatprep.subr.mxu0 0.0
        %738 = vmatpush2.msra.mxu0 0.0
        %739 = vmatprep.subr.mxu0 0.0
        %740 = vmatpush2.msra.mxu0 0.0
        %741 = vmatprep.subr.mxu0 0.0
        %742 = vmatpush2.msra.mxu0 0.0
        %743 = vmatprep.subr.mxu0 0.0
        %744 = vmatpush2.msra.mxu0 0.0
        %745 = vmatprep.subr.mxu0 0.0
        %746 = vmatpush2.msra.mxu0 0.0
        %747 = vmatprep.subr.mxu0 0.0
        %748 = vmatpush2.msra.mxu0 0.0
        %749 = vmatprep.subr.mxu0 0.0
        %750 = vmatpush2.msra.mxu0 0.0
        %751 = vmatprep.mubr.f32.mxu0 0.0
        %752 = vmatmul.mubr.f32.gmra.mxu0 %v685
        %v753 = vpop.f32.mrf.mxu0
        %v754 = vadd.f32 %v680, %v753
        %v755 = vpop.f32.mrf.mxu0
        %756 = vdwg.mxu0
        %s757 = sld [smem:[#allocation2]]
        %v758 = vstv %s757
        %v759 = vadd.f32 %v754, %v758
        %760 = vst [vmem:[%s383] sm:$0xf] %v759
        %s761 = sand.u32 %s231, 1
        %s762 = scalar_lea.sflag [#allocation5], %s761
        %s763 = sand.u32 %s231, 1
        %s764 = smul.addr %s763, 4
        %s765 = scalar_lea.vmem [#allocation4], %s764
        // Predicated region
        $region95: #{pod_deeponet_forward.1} parent=89 // pred_check
          %p766 = pneg %p241
        $region96: #{pod_deeponet_forward.1} parent=89 // pred_check_branch
          %768 = sbr.rel (%p766) target = $region98
        $region97: #{pod_deeponet_forward.1} parent=89 // pred_region
          %s770 = ssub.s32 64, 64
          %771 = vsyncadd %s762, %s770
          %s772 = smul.addr %s24, 64
          %s773 = scalar_lea.hbm %s9, %s772
          %s775 = sshll.u32 %s765, 4
          %s776 = int_to_ptr.vmem [resolvable:$true] %s775
          %778 = dma.vmem_to_hbm [thread:$0]  %s776, 64, %s773, %s762
        $region98: #{pod_deeponet_forward.1} parent=89 // pred_fallthru
          _
      $region90: #{pod_deeponet_forward.1} parent=5 // pred_fallthru
        _
      %p779 = scmp.le.s32.totalorder 2, %s19
      // Predicated region
      $region99: #{pod_deeponet_forward.1} parent=5 // pred_check
        %p780 = pneg %p779
      $region100: #{pod_deeponet_forward.1} parent=5 // pred_check_branch
        %782 = sbr.rel (%p780) target = $region102
      $region101: #{pod_deeponet_forward.1} parent=5 // pred_region
        %s783 = ssub.s32 %s19, 2
        // Predicated region
        $region103: #{pod_deeponet_forward.1} parent=101 // pred_check
          %p784 = pneg %p247
        $region104: #{pod_deeponet_forward.1} parent=101 // pred_check_branch
          %786 = sbr.rel (%p784) target = $region106
        $region105: #{pod_deeponet_forward.1} parent=101 // pred_region
          %s787 = sand.u32 %s232, 1
          %s788 = scalar_lea.sflag [#allocation5], %s787
          %s789 = sand.u32 %s232, 1
          %s790 = smul.addr %s789, 4
          %s791 = scalar_lea.vmem [#allocation4], %s790
          %792 = dma.done %s788, 64
        $region106: #{pod_deeponet_forward.1} parent=101 // pred_fallthru
          _
      $region102: #{pod_deeponet_forward.1} parent=5 // pred_fallthru
        _
    $region6: #{pod_deeponet_forward.1} parent=1 // loop_footer
      %s23 = sadd.s32 1, %s19
    $region7: #{pod_deeponet_forward.1} parent=1 // loop_footer_branch
      %18 = sbr.rel target = $region3
    $region8: #{pod_deeponet_forward.1} parent=1 // loop_exit
      _
    %793 = vsyncpa [#allocation5], 1
    %s794 = scalar_lea.sflag [#allocation5], 1
    %795 = vsyncpa %s794, 1

</llo_original>
